<compile_context>
chip_gen: v5e
topology: v5e:2x2
jax: 0.10.0
libtpu: 0.0.40
codegen_flags: <defaults>
</compile_context>

<pallas_src>
import functools

import jax
import jax.numpy as jnp
from jax.experimental import pallas as pl
from jax.experimental.pallas import tpu as pltpu


# ---------------------------------------------------------------------------
# Kernel bodies
# ---------------------------------------------------------------------------

def _gate_and_reduce(z, o_ref, *, num_feat, use_mxu_reduce):
    """sigmoid(z)*tanh(z) summed over each group of num_feat consecutive rows."""
    # Single transcendental: t = tanh(z/2)
    #   sigmoid(z) = (1+t)/2 ,  tanh(z) = 2t/(1+t^2)
    #   => sigmoid(z)*tanh(z) = t*(1+t) / (1+t^2)
    t = jnp.tanh(0.5 * z)
    fused = (t * (1.0 + t)) * pl.reciprocal(1.0 + t * t, approx=True)  # EUP slot

    rows, cols = fused.shape
    groups = rows // num_feat
    if num_feat == 1:
        red = fused
    elif use_mxu_reduce:
        # Group-sum as a (groups x rows) 0/1 matmul: runs on the MXU (slack in
        # this mem-bound kernel) instead of XLU sublane gathers.
        r = jax.lax.broadcasted_iota(jnp.int32, (groups, rows), 0)
        c = jax.lax.broadcasted_iota(jnp.int32, (groups, rows), 1)
        start = r * num_feat
        sel = jnp.logical_and(c >= start, c < start + num_feat)
        ones = sel.astype(jnp.float32)
        red = jnp.dot(ones, fused, preferred_element_type=jnp.float32)
    else:
        # Exact VPU/XLU reduction fallback (num_feat-strided sublane sum).
        red = fused.reshape(groups, num_feat, cols).sum(axis=1)
    o_ref[...] = red.astype(o_ref.dtype)


def _kernel_single_k(x_ref, w_ref, b_ref, o_ref, *, num_feat, use_mxu_reduce):
    # bf16/f32 operands go straight to the MXU, accumulate in f32.
    z = jnp.dot(x_ref[...], w_ref[...], preferred_element_type=jnp.float32)
    z = z + b_ref[...]                         # bias already f32
    _gate_and_reduce(z, o_ref, num_feat=num_feat, use_mxu_reduce=use_mxu_reduce)


def _kernel_k_tiled(x_ref, w_ref, b_ref, o_ref, acc_ref, *, num_feat,
                    use_mxu_reduce):
    k = pl.program_id(2)

    @pl.when(k == 0)
    def _():
        acc_ref[...] = jnp.zeros_like(acc_ref)

    acc_ref[...] += jnp.dot(x_ref[...], w_ref[...],
                            preferred_element_type=jnp.float32)

    @pl.when(k == pl.num_programs(2) - 1)
    def _():
        _gate_and_reduce(acc_ref[...] + b_ref[...], o_ref,
                         num_feat=num_feat, use_mxu_reduce=use_mxu_reduce)


# ---------------------------------------------------------------------------
# Wrapper
# ---------------------------------------------------------------------------

def _vmem_capacity_bytes():
    try:
        info = pltpu.get_tpu_info()
        cap = getattr(info, "vmem_capacity_bytes", None)
        if cap:
            return int(cap)
    except Exception:
        pass
    return 64 * 1024 * 1024      # conservative default (v7x per-TC VMEM)


def gated_fusion_block(x, w_t, bias, num_feat, *,
                       block_groups=None, block_out=None, block_k=None):
    """Pallas equivalent of GatedFusionBLock.forward.

    Args:
      x:    (N, in_dim), N % num_feat == 0.
      w_t:  (in_dim, out_dim) -- nn.Linear weight transposed ONCE at init.
      bias: (out_dim,)
      num_feat: group size reduced over.
    Returns:
      (N // num_feat, out_dim) in x.dtype.
    """
    n, in_dim = x.shape
    in_dim_w, out_dim = w_t.shape
    assert in_dim == in_dim_w, f"x.shape[1]: {in_dim}, in_dim: {in_dim_w}"
    assert n % num_feat == 0, f"x.shape[0]: {n}, num_feat: {num_feat}"
    assert x.dtype == w_t.dtype
    n_groups = n // num_feat

    x_isz = jnp.dtype(x.dtype).itemsize
    w_isz = jnp.dtype(w_t.dtype).itemsize
    o_isz = x_isz

    # ---- generation-aware VMEM budget ----
    cap = _vmem_capacity_bytes()
    tile_budget = int(cap * 0.60)       # leave headroom for relayout scratch
    vmem_cap = int(cap * 0.85)

    # ---- K tiling: keep VMEM independent of in_dim ----
    if block_k is None:
        if in_dim > 2048 and in_dim % 128 == 0:
            block_k = 128
            for cand in range(2048, 127, -128):
                if in_dim % cand == 0:
                    block_k = cand
                    break
        else:
            # TODO(synk): very large in_dim not divisible by 128 cannot be
            # K-tiled safely (padded-K garbage would corrupt the reduction).
            block_k = in_dim
    assert block_k <= in_dim
    assert block_k == in_dim or (block_k % 128 == 0 and in_dim % block_k == 0)
    n_k = in_dim // block_k if block_k != in_dim else 1

    def est_bytes(bg, bo):
        br = bg * num_feat
        b = 2 * br * block_k * x_isz           # x tile (double buffered)
        b += 2 * block_k * bo * w_isz          # weight tile
        b += 2 * bo * 4                        # bias (f32)
        b += 2 * bg * bo * o_isz               # output tile
        if n_k > 1:
            b += br * bo * 4                   # f32 accumulator scratch
        b += 2 * br * bo * 4                   # f32 epilogue temporaries
        return b

    row_align = 16 if x_isz < 4 else 8         # bf16 packs 16 rows / vreg
    max_rows = 4096

    # block_out candidates: full out_dim first (single pass over x), then
    # lane-dense / MXU-friendly fallbacks.
    if block_out is not None:
        out_cands = [block_out]
    else:
        out_cands = [out_dim]
        for c in (2048, 1024, 512, 256, 128):
            if c < out_dim:
                out_cands.append(c)

    # block_groups candidates (descending), each a legal sublane-dense tile.
    if block_groups is not None:
        bg_cands = [block_groups]
    else:
        bg_cands = []
        if n_groups * num_feat <= max_rows or n_groups < row_align:
            bg_cands.append(n_groups)
        bg = min(n_groups, max(1, max_rows // max(1, num_feat)))
        bg = (bg // row_align) * row_align
        while bg >= row_align:
            if bg < n_groups and bg not in bg_cands:
                bg_cands.append(bg)
            bg = ((bg // 2) // row_align) * row_align
        if not bg_cands:
            bg_cands.append(n_groups)

    chosen = None
    min_rows = min(n, 256)                     # keep a decent MXU M-dim
    for need_min_rows in (True, False):
        if chosen:
            break
        for bo in out_cands:
            for bg in bg_cands:
                if need_min_rows and bg * num_feat < min_rows and bg != n_groups:
                    continue
                if est_bytes(bg, bo) <= tile_budget:
                    chosen = (bg, bo)
                    break
            if chosen:
                break
    if chosen is None:
        chosen = (bg_cands[-1], out_cands[-1])
    block_groups, block_out = chosen
    block_rows = block_groups * num_feat

    assert block_out <= out_dim and (block_out == out_dim or block_out % 128 == 0)
    assert block_groups <= n_groups and (
        block_groups == n_groups or (block_groups * num_feat) % 8 == 0)

    n_out_t = pl.cdiv(out_dim, block_out)
    n_grp_t = pl.cdiv(n_groups, block_groups)

    # MXU reduction only when extra MXU work is modest relative to the main
    # matmul and there is no remainder group tile (garbage rows * 0 -> NaN).
    use_mxu_reduce = (num_feat > 1 and block_groups <= in_dim
                      and n_groups % block_groups == 0)

    # ---- grid order: restream the cheaper operand ----
    x_bytes = n * in_dim * x_isz
    w_bytes = in_dim * out_dim * w_isz
    cost_out_outer = x_bytes * n_out_t + w_bytes * (n_grp_t if n_k > 1 else 1)
    cost_grp_outer = w_bytes * n_grp_t + x_bytes * (n_out_t if n_k > 1 else 1)
    if cost_out_outer <= cost_grp_outer:
        grid = (n_out_t, n_grp_t, n_k)
        x_map = lambda o, g, k: (g, k)
        w_map = lambda o, g, k: (k, o)
        b_map = lambda o, g, k: (0, o)
        o_map = lambda o, g, k: (g, o)
        traffic = cost_out_outer
    else:
        grid = (n_grp_t, n_out_t, n_k)
        x_map = lambda g, o, k: (g, k)
        w_map = lambda g, o, k: (k, o)
        b_map = lambda g, o, k: (0, o)
        o_map = lambda g, o, k: (g, o)
        traffic = cost_grp_outer

    b2 = bias.astype(jnp.float32).reshape(1, out_dim)   # pre-cast once

    est = est_bytes(block_groups, block_out)
    vmem_limit = int(min(vmem_cap, max(32 * 1024 * 1024, int(est * 1.5))))

    flops = 2 * n * in_dim * out_dim
    if use_mxu_reduce:
        flops += 2 * n_groups * block_rows * out_dim
    cost = pl.CostEstimate(
        flops=int(flops),
        transcendentals=int(n * out_dim),
        bytes_accessed=int(traffic + out_dim * 4 + n_groups * out_dim * o_isz),
    )

    if n_k == 1:
        kernel = functools.partial(_kernel_single_k, num_feat=num_feat,
                                   use_mxu_reduce=use_mxu_reduce)
        scratch_shapes = []
    else:
        kernel = functools.partial(_kernel_k_tiled, num_feat=num_feat,
                                   use_mxu_reduce=use_mxu_reduce)
        scratch_shapes = [pltpu.VMEM((block_rows, block_out), jnp.float32)]

    return pl.pallas_call(
        kernel,
        out_shape=jax.ShapeDtypeStruct((n_groups, out_dim), x.dtype),
        grid_spec=pltpu.PrefetchScalarGridSpec(
            num_scalar_prefetch=0,
            grid=grid,
            in_specs=[
                pl.BlockSpec((block_rows, block_k), x_map),
                pl.BlockSpec((block_k, block_out), w_map),
                pl.BlockSpec((1, block_out), b_map),
            ],
            out_specs=pl.BlockSpec((block_groups, block_out), o_map),
            scratch_shapes=scratch_shapes,
        ),
        compiler_params=pltpu.CompilerParams(
            dimension_semantics=("parallel", "parallel", "arbitrary"),
            vmem_limit_bytes=vmem_limit,
        ),
        cost_estimate=cost,
    )(x, w_t, b2)


# ---------------------------------------------------------------------------
# Reference + tests
# ---------------------------------------------------------------------------

def _reference(x, w_t, bias, num_feat):
    z = x.astype(jnp.float32) @ w_t.astype(jnp.float32) + bias.astype(jnp.float32)
    out_dim = w_t.shape[1]
    z = z.reshape(-1, num_feat, out_dim).transpose(1, 0, 2)
    return (jax.nn.sigmoid(z) * jnp.tanh(z)).sum(axis=0)


def _make_inputs(key, n, in_dim, out_dim, dtype=jnp.float32):
    kx, kw, kb = jax.random.split(key, 3)
    x = jax.random.normal(kx, (n, in_dim), jnp.float32)
    bound = 1.0 / (in_dim ** 0.5)            # nn.Linear default init range
    weight = jax.random.uniform(kw, (out_dim, in_dim), jnp.float32, -bound, bound)
    bias = jax.random.uniform(kb, (out_dim,), jnp.float32, -bound, bound)
    # Weight transposed ONCE here ("at init"), not per call.
    return x.astype(dtype), weight.T.astype(dtype), bias.astype(dtype)


if __name__ == "__main__":
    key = jax.random.PRNGKey(0)
    k1, k2, k3, k4, key = jax.random.split(key, 5)
    # f32 tolerance covers the EUP approx reciprocal (~1e-3 relative in gate).
    TOL = dict(atol=1e-2, rtol=1e-2)

    # 1) Small shapes consistent with the module (num_feat=4, 32 -> 32), auto tiles.
    num_feat, in_dim, out_dim, groups = 4, 32, 32, 2
    x, w_t, bias = _make_inputs(k1, groups * num_feat, in_dim, out_dim)
    out = jax.block_until_ready(gated_fusion_block(x, w_t, bias, num_feat))
    ref = _reference(x, w_t, bias, num_feat)
    assert out.shape == (groups, out_dim), out.shape
    assert jnp.allclose(out, ref, **TOL), "mismatch (small f32)"

    # 2) Multi-step 2-D pipelined grid, MXU group reduction.
    num_feat, in_dim, out_dim, groups = 4, 128, 256, 96
    x, w_t, bias = _make_inputs(k2, groups * num_feat, in_dim, out_dim)
    out = jax.block_until_ready(
        gated_fusion_block(x, w_t, bias, num_feat, block_groups=32, block_out=128))
    ref = _reference(x, w_t, bias, num_feat)
    assert out.shape == (groups, out_dim), out.shape
    assert jnp.allclose(out, ref, **TOL), "mismatch (tiled f32)"

    # 3) K-tiled path (in_dim split across grid axis 2 with f32 accumulator).
    num_feat, in_dim, out_dim, groups = 4, 256, 256, 64
    xk, wk, bk = _make_inputs(k3, groups * num_feat, in_dim, out_dim)
    out = jax.block_until_ready(
        gated_fusion_block(xk, wk, bk, num_feat,
                           block_groups=32, block_out=128, block_k=128))
    ref = _reference(xk, wk, bk, num_feat)
    assert out.shape == (groups, out_dim), out.shape
    assert jnp.allclose(out, ref, **TOL), "mismatch (k-tiled f32)"

    # 4) Reshape-sum reduction path (block_groups > in_dim disables MXU reduce).
    num_feat, in_dim, out_dim, groups = 2, 32, 64, 48
    xr, wr, br = _make_inputs(k4, groups * num_feat, in_dim, out_dim)
    out = jax.block_until_ready(gated_fusion_block(xr, wr, br, num_feat))
    ref = _reference(xr, wr, br, num_feat)
    assert out.shape == (groups, out_dim), out.shape
    assert jnp.allclose(out, ref, **TOL), "mismatch (reshape-sum f32)"

    # 5) bf16 path: operands fed straight to the MXU, f32 epilogue.
    num_feat, in_dim, out_dim, groups = 4, 128, 256, 96
    xb, wtb, bb = (x.astype(jnp.bfloat16), w_t.astype(jnp.bfloat16),
                   bias.astype(jnp.bfloat16))
    out_bf = jax.block_until_ready(
        gated_fusion_block(xb, wtb, bb, num_feat, block_groups=32, block_out=128))
    ref_bf = _reference(xb, wtb, bb, num_feat)
    assert out_bf.dtype == jnp.bfloat16 and out_bf.shape == (groups, out_dim)
    assert jnp.allclose(out_bf.astype(jnp.float32), ref_bf, atol=0.1, rtol=0.1), \
        "mismatch (tiled bf16)"

    print("KERNEL_OK")
</pallas_src>

<mosaic_0001>
module attributes {stable_mosaic.version = 11 : i64} {
  func.func @_kernel_single_k(%arg0: i32, %arg1: i32, %arg2: i32, %arg3: memref<8x32xf32, #tpu.memory_space<vmem>>, %arg4: memref<32x32xf32, #tpu.memory_space<vmem>>, %arg5: memref<1x32xf32, #tpu.memory_space<vmem>>, %arg6: memref<2x32xf32, #tpu.memory_space<vmem>>) attributes {dimension_semantics = [#tpu.dimension_semantics<parallel>, #tpu.dimension_semantics<parallel>, #tpu.dimension_semantics<arbitrary>], iteration_bounds = array<i64: 1, 1, 1>, scalar_prefetch = 0 : i64, scratch_operands = 0 : i64, tpu.core_type = #tpu.core_type<tc>, window_params = [{transform_indices = @transform_0, window_bounds = array<i64: 8, 32>}, {transform_indices = @transform_1, window_bounds = array<i64: 32, 32>}, {transform_indices = @transform_2, window_bounds = array<i64: 1, 32>}, {transform_indices = @transform_3, window_bounds = array<i64: 2, 32>}]} {
    %c0 = arith.constant 0 : index
    %c0_0 = arith.constant 0 : index
    %0 = vector.load %arg3[%c0, %c0_0] : memref<8x32xf32, #tpu.memory_space<vmem>>, vector<8x32xf32>
    %c0_1 = arith.constant 0 : index
    %c0_2 = arith.constant 0 : index
    %1 = vector.load %arg4[%c0_1, %c0_2] : memref<32x32xf32, #tpu.memory_space<vmem>>, vector<32x32xf32>
    %cst = arith.constant dense<0.000000e+00> : vector<8x32xf32>
    %2 = tpu.matmul %0, %1, %cst {dimension_numbers = #tpu.dot_dimension_numbers<[1], [0], [0], [1], [0, 0, 1, 1], [], []>} : vector<8x32xf32>, vector<32x32xf32>, vector<8x32xf32> -> vector<8x32xf32>
    %c0_3 = arith.constant 0 : index
    %c0_4 = arith.constant 0 : index
    %3 = vector.load %arg5[%c0_3, %c0_4] : memref<1x32xf32, #tpu.memory_space<vmem>>, vector<1x32xf32>
    %4 = vector.broadcast %3 : vector<1x32xf32> to vector<8x32xf32>
    %5 = arith.addf %2, %4 : vector<8x32xf32>
    %cst_5 = arith.constant 5.000000e-01 : f32
    %6 = vector.broadcast %cst_5 : f32 to vector<8x32xf32>
    %7 = arith.mulf %6, %5 : vector<8x32xf32>
    %8 = math.tanh %7 : vector<8x32xf32>
    %cst_6 = arith.constant 1.000000e+00 : f32
    %9 = vector.broadcast %cst_6 : f32 to vector<8x32xf32>
    %10 = arith.addf %9, %8 : vector<8x32xf32>
    %11 = arith.mulf %8, %10 : vector<8x32xf32>
    %12 = arith.mulf %8, %8 : vector<8x32xf32>
    %cst_7 = arith.constant 1.000000e+00 : f32
    %13 = vector.broadcast %cst_7 : f32 to vector<8x32xf32>
    %14 = arith.addf %13, %12 : vector<8x32xf32>
    %15 = tpu.reciprocal %14 {approx = true} : vector<8x32xf32> -> vector<8x32xf32>
    %16 = arith.mulf %11, %15 : vector<8x32xf32>
    %17 = tpu.iota {dimensions = array<i32: 0>} : vector<2x8xi32>
    %18 = tpu.iota {dimensions = array<i32: 1>} : vector<2x8xi32>
    %c4_i32 = arith.constant 4 : i32
    %19 = vector.broadcast %c4_i32 : i32 to vector<2x8xi32>
    %20 = arith.muli %17, %19 : vector<2x8xi32>
    %21 = arith.cmpi sge, %18, %20 : vector<2x8xi32>
    %c4_i32_8 = arith.constant 4 : i32
    %22 = vector.broadcast %c4_i32_8 : i32 to vector<2x8xi32>
    %23 = arith.addi %20, %22 : vector<2x8xi32>
    %24 = arith.cmpi slt, %18, %23 : vector<2x8xi32>
    %25 = arith.andi %21, %24 : vector<2x8xi1>
    %26 = arith.extui %25 : vector<2x8xi1> to vector<2x8xi32>
    %27 = arith.sitofp %26 : vector<2x8xi32> to vector<2x8xf32>
    %cst_9 = arith.constant dense<0.000000e+00> : vector<2x32xf32>
    %28 = tpu.matmul %27, %16, %cst_9 {dimension_numbers = #tpu.dot_dimension_numbers<[1], [0], [0], [1], [0, 0, 1, 1], [], []>} : vector<2x8xf32>, vector<8x32xf32>, vector<2x32xf32> -> vector<2x32xf32>
    %c0_10 = arith.constant 0 : index
    %c0_11 = arith.constant 0 : index
    %29 = vector.load %arg6[%c0_10, %c0_11] : memref<2x32xf32, #tpu.memory_space<vmem>>, vector<2x32xf32>
    tpu.vector_store %arg6[%c0_10, %c0_11], %28 {strides = array<i32>} : memref<2x32xf32, #tpu.memory_space<vmem>>, vector<2x32xf32>,
    return
  }
  func.func @transform_0(%arg0: i32, %arg1: i32, %arg2: i32) -> (i32, i32) {
    %c0_i32 = arith.constant 0 : i32
    return %arg1, %arg2 : i32, i32
  }
  func.func @transform_1(%arg0: i32, %arg1: i32, %arg2: i32) -> (i32, i32) {
    %c0_i32 = arith.constant 0 : i32
    return %arg2, %arg0 : i32, i32
  }
  func.func @transform_2(%arg0: i32, %arg1: i32, %arg2: i32) -> (i32, i32) {
    %c0_i32 = arith.constant 0 : i32
    %c0_i32_0 = arith.constant 0 : i32
    return %c0_i32, %arg0 : i32, i32
  }
  func.func @transform_3(%arg0: i32, %arg1: i32, %arg2: i32) -> (i32, i32) {
    %c0_i32 = arith.constant 0 : i32
    return %arg1, %arg0 : i32, i32
  }
}

</mosaic_0001>

<llo_original>
// kernel: tpu_custom_call.1
$region0: #{tpu_custom_call.1}
  #allocation0 [shape = 'u32[]', space=smem, size = 0x4, offset = 0x4, fixed_abs, tag = 'smem constant byte address 0x4 - core index']
  #allocation1 [shape = 'u32[72,128]{1,0:T(1,128)}', space=vmem, size = 0x9000, scoped, tag = 'internal scratch']
  %s0 = inlined_call_operand.hbm [shape: f32[8,32], index: 0, kind: input, shape index: {}]
  %s1 = inlined_call_operand.hbm [shape: f32[32,32], index: 1, kind: input, shape index: {}]
  %s2 = inlined_call_operand.vmem [shape: f32[1,32], index: 2, kind: input, shape index: {}]
  %s3 = inlined_call_operand.hbm [shape: f32[2,32], index: 3, kind: output, shape index: {}]
  %s4 = sld [smem:[#allocation0]]
  $region30: #{tpu_custom_call.1} parent=0
    _
  %s6 = ssub.s32 1, %s4
  %s7 = scalar_select 0, %s6, %s4
  $region1: #{tpu_custom_call.1} parent=0
    #allocation2 [shape = 'u8[4096]{0}', space=vmem, size = 0x1000, scoped, tag = 'input window, operand 0, single buffered']
    #allocation3 [shape = 's32[1]{0}', space=sflag, size = 0x4, scoped, tag = 'scoped memory for tpu_custom_call.1']
    #allocation4 [shape = 's32[1]{0}', space=sflag, size = 0x4, scoped, tag = 'scoped memory for tpu_custom_call.1']
    #allocation5 [shape = 'u8[16384]{0}', space=vmem, size = 0x4000, scoped, tag = 'input window, operand 1, single buffered']
    #allocation6 [shape = 's32[1]{0}', space=sflag, size = 0x4, scoped, tag = 'scoped memory for tpu_custom_call.1']
    #allocation7 [shape = 'u8[1024]{0}', space=vmem, size = 0x400, scoped, tag = 'output window, operand 0, single buffered']
    %8 = vsyncpa [#allocation3], 0
    %9 = vsyncpa [#allocation6], 0
    %10 = vsyncpa [#allocation4], 0
    // Predicated region
    $region2: #{tpu_custom_call.1} parent=1 // pred_check
      _
    $region3: #{tpu_custom_call.1} parent=1 // pred_check_branch
      %12 = sbr.rel (0) target = $region5
    $region4: #{tpu_custom_call.1} parent=1 // pred_region
      %14 = vsyncadd [#allocation3], 0
      %s16 = sshll.u32 %s0, 4
      %s17 = int_to_ptr.hbm [resolvable:$true] %s16
      %s18 = sshll.u32 [#allocation2], 4
      %s19 = int_to_ptr.vmem [resolvable:$true] %s18
      %21 = dma.hbm_to_vmem [thread:$0]  %s17, 128, %s19, [#allocation3]
    $region5: #{tpu_custom_call.1} parent=1 // pred_fallthru
      _
    // Predicated region
    $region6: #{tpu_custom_call.1} parent=1 // pred_check
      _
    $region7: #{tpu_custom_call.1} parent=1 // pred_check_branch
      %23 = sbr.rel (0) target = $region9
    $region8: #{tpu_custom_call.1} parent=1 // pred_region
      %25 = vsyncadd [#allocation6], 0
      %s26 = sshll.u32 %s1, 4
      %s27 = int_to_ptr.hbm [resolvable:$true] %s26
      %s28 = sshll.u32 [#allocation5], 4
      %s29 = int_to_ptr.vmem [resolvable:$true] %s28
      %34 = dma.hbm_to_vmem [thread:$0]  %s27, 512, %s29, [#allocation6], 128, 128, 8
    $region9: #{tpu_custom_call.1} parent=1 // pred_fallthru
      _
    // Predicated region
    $region10: #{tpu_custom_call.1} parent=1 // pred_check
      _
    $region11: #{tpu_custom_call.1} parent=1 // pred_check_branch
      %36 = sbr.rel (0) target = $region13
    $region12: #{tpu_custom_call.1} parent=1 // pred_region
      _
    $region13: #{tpu_custom_call.1} parent=1 // pred_fallthru
      _
    // Predicated region
    $region14: #{tpu_custom_call.1} parent=1 // pred_check
      _
    $region15: #{tpu_custom_call.1} parent=1 // pred_check_branch
      %38 = sbr.rel (0) target = $region17
    $region16: #{tpu_custom_call.1} parent=1 // pred_region
      %40 = dma.done [#allocation3], 128
    $region17: #{tpu_custom_call.1} parent=1 // pred_fallthru
      _
    // Predicated region
    $region18: #{tpu_custom_call.1} parent=1 // pred_check
      _
    $region19: #{tpu_custom_call.1} parent=1 // pred_check_branch
      %42 = sbr.rel (0) target = $region21
    $region20: #{tpu_custom_call.1} parent=1 // pred_region
      %44 = dma.done [#allocation6], 512
    $region21: #{tpu_custom_call.1} parent=1 // pred_fallthru
      _
    %v45 = vld [vmem:[#allocation2] sm:$0xff]
    %v46 = vld [vmem:[#allocation5] sm:$0xff]
    %v47 = vld [vmem:[#allocation5 + $0x8] sm:$0xff]
    %v48 = vld [vmem:[#allocation5 + $0x10] sm:$0xff]
    %v49 = vld [vmem:[#allocation5 + $0x18] sm:$0xff]
    %v50 = vld [vmem:[%s2] sm:$0x1]
    %v52 = vperm.slane %v50, 0
    %vm54 = vcmask 261120
    %v56 = vsel %vm54, %v45, 0
    %58 = vmatpush.msra.mxu0 0.0
    %59 = vmatpush.msra.mxu0 0.0
    %60 = vmatpush.msra.mxu0 0.0
    %61 = vmatpush.msra.mxu0 0.0
    %62 = vmatpush.msra.mxu0 0.0
    %63 = vmatpush.msra.mxu0 0.0
    %64 = vmatpush.msra.mxu0 0.0
    %65 = vmatpush.msra.mxu0 0.0
    %66 = vmatpush.msra.mxu0 0.0
    %67 = vmatpush.msra.mxu0 0.0
    %68 = vmatpush.msra.mxu0 0.0
    %69 = vmatpush.msra.mxu0 0.0
    %70 = vmatpush.msra.mxu0 %v49
    %71 = vmatpush.msra.mxu0 %v48
    %72 = vmatpush.msra.mxu0 %v47
    %73 = vmatpush.msra.mxu0 %v46
    %74 = vmatmul.f32.gmra.mxu0 %v56
    %v75 = vpop.f32.mrf.mxu0
    %v76 = vadd.f32 %v52, %v75
    %77 = vdwg.mxu0
    %v78 = vmul.f32 %v76, 0.5
    %v79 = vtanh.pop %v78
    %v80 = vadd.f32 %v79, 1.0
    %v81 = vmul.f32 %v79, %v80
    %v82 = vmul.f32 %v79, %v79
    %v83 = vadd.f32 %v82, 1.0
    %v84 = vrcp.pop %v83
    %v85 = vmul.f32 %v81, %v84
    %v86 = vlaneseq
    %v87 = vshrl.u32 %v86, 7
    %v88 = vlaneseq
    %v89 = vand.u32 %v88, 127
    %v90 = vmul.u32 %v87, 4
    %vm91 = vcmp.ge.s32.totalorder %v89, %v90
    %v92 = vadd.s32 %v90, 4
    %vm93 = vcmp.lt.s32.totalorder %v89, %v92
    %vm94 = vmand %vm91, %vm93
    %v95 = vsel %vm94, 1, 0
    %v96 = vcvt.s32.f32 %v95
    %vm97 = vcmask 64512
    %v99 = vsel %vm97, %v96, 0
    %101 = vmatpush.msra.mxu0 0.0
    %102 = vmatpush.msra.mxu0 0.0
    %103 = vmatpush.msra.mxu0 0.0
    %104 = vmatpush.msra.mxu0 0.0
    %105 = vmatpush.msra.mxu0 0.0
    %106 = vmatpush.msra.mxu0 0.0
    %107 = vmatpush.msra.mxu0 0.0
    %108 = vmatpush.msra.mxu0 0.0
    %109 = vmatpush.msra.mxu0 0.0
    %110 = vmatpush.msra.mxu0 0.0
    %111 = vmatpush.msra.mxu0 0.0
    %112 = vmatpush.msra.mxu0 0.0
    %113 = vmatpush.msra.mxu0 0.0
    %114 = vmatpush.msra.mxu0 0.0
    %115 = vmatpush.msra.mxu0 0.0
    %116 = vmatpush.msra.mxu0 %v85
    %117 = vmatmul.f32.gmra.mxu0 %v99
    %v118 = vpop.f32.mrf.mxu0
    %v119 = vadd.f32 0.0, %v118
    %120 = vdwg.mxu0
    %vm121 = vcmask 254976
    %122 = vst.msk [vmem:[#allocation7] sm:$0x3] %vm121, %v119
    // Predicated region
    $region22: #{tpu_custom_call.1} parent=1 // pred_check
      _
    $region23: #{tpu_custom_call.1} parent=1 // pred_check_branch
      %124 = sbr.rel (0) target = $region25
    $region24: #{tpu_custom_call.1} parent=1 // pred_region
      %126 = vsyncadd [#allocation4], 0
      %s128 = sshll.u32 [#allocation7], 4
      %s129 = int_to_ptr.vmem [resolvable:$true] %s128
      %s130 = sshll.u32 %s3, 4
      %s131 = int_to_ptr.hbm [resolvable:$true] %s130
      %133 = dma.vmem_to_hbm [thread:$0]  %s129, 32, %s131, [#allocation4]
    $region25: #{tpu_custom_call.1} parent=1 // pred_fallthru
      _
    // Predicated region
    $region26: #{tpu_custom_call.1} parent=1 // pred_check
      _
    $region27: #{tpu_custom_call.1} parent=1 // pred_check_branch
      %135 = sbr.rel (0) target = $region29
    $region28: #{tpu_custom_call.1} parent=1 // pred_region
      %137 = dma.done [#allocation4], 32
    $region29: #{tpu_custom_call.1} parent=1 // pred_fallthru
      _
    %138 = vsyncpa [#allocation3], 1
    %139 = vsyncpa [#allocation6], 1
    %140 = vsyncpa [#allocation4], 1

</llo_original>
